<compile_context>
chip_gen: v7x
topology: tpu7x:2x2x1
jax: 0.10.0
libtpu: 0.0.40
codegen_flags: <defaults>
</compile_context>

<pallas_src>
import functools

import jax
import jax.numpy as jnp
from jax.experimental import pallas as pl
from jax.experimental.pallas import tpu as pltpu

INPUT_DIM = 290
HIDDEN = [256, 128, 64, 32]   # path_dim = 32
LABEL_DIM = 1
PACK_W = 128                  # lane-dense packed-output width
OUT_LANE = HIDDEN[3]          # lanes >= 32 of the packed slab hold the logit


def _round_up(n, m):
    return (n + m - 1) // m * m


def _silu(v):
    # SiLU(x) = x * sigmoid(x) = x / (1 + exp(-x)); exp -> EUP, divide -> VPU.
    return v / (1.0 + jnp.exp(-v))


def _mlp_kernel(x_ref,
                w1_ref, b1_ref,
                w2_ref, b2_ref,
                w3_ref, b3_ref,
                w4_ref, b4_ref,
                wc_ref, bc_ref,
                packed_ref):
    """4-layer SiLU encoder + N=1 classifier for one batch tile."""
    h = _silu(jnp.dot(x_ref[...], w1_ref[...],
                      preferred_element_type=jnp.float32) + b1_ref[...])
    h = _silu(jnp.dot(h, w2_ref[...],
                      preferred_element_type=jnp.float32) + b2_ref[...])
    h = _silu(jnp.dot(h, w3_ref[...],
                      preferred_element_type=jnp.float32) + b3_ref[...])
    # w4/b4 are zero-padded to 128 output lanes in the wrapper, so h is a
    # lane-dense (tile, 128) slab; lanes >= 32 are exactly SiLU(0) == 0.
    h = _silu(jnp.dot(h, w4_ref[...],
                      preferred_element_type=jnp.float32) + b4_ref[...])

    # K=32, N=1 classifier as VPU mul + XLU lane reduction (wc is zero-padded
    # beyond lane 32), avoiding an MXU push/drain for <1% of the FLOPs.
    logit = jnp.sum(h * wc_ref[...], axis=-1, keepdims=True) + bc_ref[...]

    # Pack: lanes [0, 32) = features, lanes [32, 128) = broadcast logit.
    lane = jax.lax.broadcasted_iota(jnp.int32, h.shape, dimension=1)
    packed_ref[...] = jnp.where(lane < OUT_LANE, h,
                                jnp.broadcast_to(logit, h.shape))


@functools.partial(jax.jit, static_argnames=("tile_b",))
def pathnet_paep_forward(pa1, pa2, pa3, pa4, params, tile_b=512):
    """Mirrors PATHNet_PaEp.forward(**kwargs); only pa2 feeds the network."""
    del pa1, pa3, pa4  # unused, as in the reference module
    x = pa2.astype(jnp.float32)
    batch = x.shape[0]

    # Batch tile: multiple of 8 sublanes, capped at tile_b rows.  With the
    # default 512-row tile, the double-buffered x/out tiles plus the resident
    # weights total only a few MiB -- safely under the default scoped-VMEM
    # limit on every generation (including v7x's 64 MiB physical VMEM).
    tb = min(int(tile_b), _round_up(batch, 8))
    padded = _round_up(batch, tb)
    if padded != batch:
        x = jnp.pad(x, ((0, padded - batch), (0, 0)))

    # Zero-pad layer-4 / classifier params to 128 lanes (lane-dense output).
    w4p = jnp.pad(params["w4"], ((0, 0), (0, PACK_W - HIDDEN[3])))
    b4p = jnp.pad(params["b4"], ((0, 0), (0, PACK_W - HIDDEN[3])))
    wcp = jnp.pad(params["wc"].T, ((0, 0), (0, PACK_W - HIDDEN[3])))  # (1, 128)
    bc = params["bc"]                                                 # (1, 1)

    inputs = (
        x,
        params["w1"], params["b1"],
        params["w2"], params["b2"],
        params["w3"], params["b3"],
        w4p, b4p,
        wcp, bc,
    )

    x_spec = pl.BlockSpec((tb, INPUT_DIM), lambda i: (i, 0))
    # Constant index maps -> weights/biases loaded once and kept VMEM-resident
    # across all batch-grid iterations.
    const_specs = [pl.BlockSpec(a.shape, lambda i: (0, 0)) for a in inputs[1:]]
    out_spec = pl.BlockSpec((tb, PACK_W), lambda i: (i, 0))

    grid = (padded // tb,)

    flops = 2 * batch * (INPUT_DIM * HIDDEN[0] + HIDDEN[0] * HIDDEN[1]
                         + HIDDEN[1] * HIDDEN[2] + HIDDEN[2] * HIDDEN[3]
                         + HIDDEN[3] * LABEL_DIM)
    transcendentals = batch * sum(HIDDEN)
    bytes_accessed = 4 * (padded * INPUT_DIM
                          + sum(int(a.size) for a in inputs[1:])
                          + padded * PACK_W)

    packed = pl.pallas_call(
        _mlp_kernel,
        grid=grid,
        in_specs=[x_spec] + const_specs,
        out_specs=out_spec,
        out_shape=jax.ShapeDtypeStruct((padded, PACK_W), jnp.float32),
        compiler_params=pltpu.CompilerParams(
            # Batch tiles are independent -> shard across TCs on v7x megacore.
            dimension_semantics=("parallel",)),
        cost_estimate=pl.CostEstimate(
            flops=flops,
            transcendentals=transcendentals,
            bytes_accessed=bytes_accessed),
    )(*inputs)

    features = packed[:batch, :HIDDEN[3]]
    out = packed[:batch, OUT_LANE:OUT_LANE + LABEL_DIM]
    return features, out


def init_params(key):
    """Xavier-uniform init matching the module's layer shapes (W stored as
    (in_features, out_features), i.e. transposed vs. PyTorch)."""
    dims = [INPUT_DIM] + HIDDEN  # 290 -> 256 -> 128 -> 64 -> 32
    params = {}
    keys = jax.random.split(key, 5)
    for i, (din, dout) in enumerate(zip(dims[:-1], dims[1:]), start=1):
        limit = (6.0 / (din + dout)) ** 0.5
        params[f"w{i}"] = jax.random.uniform(
            keys[i - 1], (din, dout), jnp.float32, -limit, limit)
        params[f"b{i}"] = jnp.zeros((1, dout), jnp.float32)
    limit = (6.0 / (HIDDEN[3] + LABEL_DIM)) ** 0.5
    params["wc"] = jax.random.uniform(
        keys[4], (HIDDEN[3], LABEL_DIM), jnp.float32, -limit, limit)
    params["bc"] = jnp.zeros((1, LABEL_DIM), jnp.float32)
    return params


def _reference(x, params):
    h = x
    for i in range(1, 5):
        h = h @ params[f"w{i}"] + params[f"b{i}"]
        h = h * jax.nn.sigmoid(h)
    out = h @ params["wc"] + params["bc"]
    return h, out


if __name__ == "__main__":
    key = jax.random.PRNGKey(0)
    k_params, k1, k2, k3, k4 = jax.random.split(key, 5)

    params = init_params(k_params)

    batch = 8
    # The four pathomics feature vectors passed as kwargs pa1..pa4.
    pa1 = jax.random.normal(k1, (batch, INPUT_DIM), jnp.float32)
    pa2 = jax.random.normal(k2, (batch, INPUT_DIM), jnp.float32)  # path_PaEp
    pa3 = jax.random.normal(k3, (batch, INPUT_DIM), jnp.float32)
    pa4 = jax.random.normal(k4, (batch, INPUT_DIM), jnp.float32)

    features, out = pathnet_paep_forward(pa1, pa2, pa3, pa4, params)
    jax.block_until_ready((features, out))

    ref_feat, ref_out = _reference(pa2, params)
    assert features.shape == (batch, HIDDEN[3])
    assert out.shape == (batch, LABEL_DIM)
    assert jnp.allclose(features, ref_feat, atol=1e-5, rtol=1e-5)
    assert jnp.allclose(out, ref_out, atol=1e-5, rtol=1e-5)

    print("KERNEL_OK")
</pallas_src>

<mosaic_0001>
module attributes {stable_mosaic.version = 11 : i64} {
  func.func @_mlp_kernel(%arg0: i32, %arg1: memref<8x290xf32, #tpu.memory_space<vmem>>, %arg2: memref<290x256xf32, #tpu.memory_space<vmem>>, %arg3: memref<1x256xf32, #tpu.memory_space<vmem>>, %arg4: memref<256x128xf32, #tpu.memory_space<vmem>>, %arg5: memref<1x128xf32, #tpu.memory_space<vmem>>, %arg6: memref<128x64xf32, #tpu.memory_space<vmem>>, %arg7: memref<1x64xf32, #tpu.memory_space<vmem>>, %arg8: memref<64x128xf32, #tpu.memory_space<vmem>>, %arg9: memref<1x128xf32, #tpu.memory_space<vmem>>, %arg10: memref<1x128xf32, #tpu.memory_space<vmem>>, %arg11: memref<1x1xf32, #tpu.memory_space<vmem>>, %arg12: memref<8x128xf32, #tpu.memory_space<vmem>>) attributes {dimension_semantics = [#tpu.dimension_semantics<parallel>], iteration_bounds = array<i64: 1>, scalar_prefetch = 0 : i64, scratch_operands = 0 : i64, tpu.core_type = #tpu.core_type<tc>, window_params = [{transform_indices = @transform_0, window_bounds = array<i64: 8, 290>}, {pipeline_mode = #tpu.pipeline_mode<synchronous>, transform_indices = @transform_1, window_bounds = array<i64: 290, 256>}, {pipeline_mode = #tpu.pipeline_mode<synchronous>, transform_indices = @transform_2, window_bounds = array<i64: 1, 256>}, {pipeline_mode = #tpu.pipeline_mode<synchronous>, transform_indices = @transform_3, window_bounds = array<i64: 256, 128>}, {pipeline_mode = #tpu.pipeline_mode<synchronous>, transform_indices = @transform_4, window_bounds = array<i64: 1, 128>}, {pipeline_mode = #tpu.pipeline_mode<synchronous>, transform_indices = @transform_5, window_bounds = array<i64: 128, 64>}, {pipeline_mode = #tpu.pipeline_mode<synchronous>, transform_indices = @transform_6, window_bounds = array<i64: 1, 64>}, {pipeline_mode = #tpu.pipeline_mode<synchronous>, transform_indices = @transform_7, window_bounds = array<i64: 64, 128>}, {pipeline_mode = #tpu.pipeline_mode<synchronous>, transform_indices = @transform_8, window_bounds = array<i64: 1, 128>}, {pipeline_mode = #tpu.pipeline_mode<synchronous>, transform_indices = @transform_9, window_bounds = array<i64: 1, 128>}, {pipeline_mode = #tpu.pipeline_mode<synchronous>, transform_indices = @transform_10, window_bounds = array<i64: 1, 1>}, {transform_indices = @transform_11, window_bounds = array<i64: 8, 128>}]} {
    %c0 = arith.constant 0 : index
    %c0_0 = arith.constant 0 : index
    %0 = vector.load %arg1[%c0, %c0_0] : memref<8x290xf32, #tpu.memory_space<vmem>>, vector<8x290xf32>
    %c0_1 = arith.constant 0 : index
    %c0_2 = arith.constant 0 : index
    %1 = vector.load %arg2[%c0_1, %c0_2] : memref<290x256xf32, #tpu.memory_space<vmem>>, vector<290x256xf32>
    %cst = arith.constant dense<0.000000e+00> : vector<8x256xf32>
    %2 = tpu.matmul %0, %1, %cst {dimension_numbers = #tpu.dot_dimension_numbers<[1], [0], [0], [1], [0, 0, 1, 1], [], []>} : vector<8x290xf32>, vector<290x256xf32>, vector<8x256xf32> -> vector<8x256xf32>
    %c0_3 = arith.constant 0 : index
    %c0_4 = arith.constant 0 : index
    %3 = vector.load %arg3[%c0_3, %c0_4] : memref<1x256xf32, #tpu.memory_space<vmem>>, vector<1x256xf32>
    %4 = vector.broadcast %3 : vector<1x256xf32> to vector<8x256xf32>
    %5 = arith.addf %2, %4 : vector<8x256xf32>
    %cst_5 = arith.constant 0.000000e+00 : f32
    %6 = vector.broadcast %cst_5 : f32 to vector<8x256xf32>
    %7 = arith.subf %6, %5 : vector<8x256xf32>
    %8 = math.exp %7 : vector<8x256xf32>
    %cst_6 = arith.constant 1.000000e+00 : f32
    %9 = vector.broadcast %cst_6 : f32 to vector<8x256xf32>
    %10 = arith.addf %9, %8 : vector<8x256xf32>
    %11 = arith.divf %5, %10 : vector<8x256xf32>
    %c0_7 = arith.constant 0 : index
    %c0_8 = arith.constant 0 : index
    %12 = vector.load %arg4[%c0_7, %c0_8] : memref<256x128xf32, #tpu.memory_space<vmem>>, vector<256x128xf32>
    %cst_9 = arith.constant dense<0.000000e+00> : vector<8x128xf32>
    %13 = tpu.matmul %11, %12, %cst_9 {dimension_numbers = #tpu.dot_dimension_numbers<[1], [0], [0], [1], [0, 0, 1, 1], [], []>} : vector<8x256xf32>, vector<256x128xf32>, vector<8x128xf32> -> vector<8x128xf32>
    %c0_10 = arith.constant 0 : index
    %c0_11 = arith.constant 0 : index
    %14 = vector.load %arg5[%c0_10, %c0_11] : memref<1x128xf32, #tpu.memory_space<vmem>>, vector<1x128xf32>
    %15 = vector.broadcast %14 : vector<1x128xf32> to vector<8x128xf32>
    %16 = arith.addf %13, %15 : vector<8x128xf32>
    %cst_12 = arith.constant 0.000000e+00 : f32
    %17 = vector.broadcast %cst_12 : f32 to vector<8x128xf32>
    %18 = arith.subf %17, %16 : vector<8x128xf32>
    %19 = math.exp %18 : vector<8x128xf32>
    %cst_13 = arith.constant 1.000000e+00 : f32
    %20 = vector.broadcast %cst_13 : f32 to vector<8x128xf32>
    %21 = arith.addf %20, %19 : vector<8x128xf32>
    %22 = arith.divf %16, %21 : vector<8x128xf32>
    %c0_14 = arith.constant 0 : index
    %c0_15 = arith.constant 0 : index
    %23 = vector.load %arg6[%c0_14, %c0_15] : memref<128x64xf32, #tpu.memory_space<vmem>>, vector<128x64xf32>
    %cst_16 = arith.constant dense<0.000000e+00> : vector<8x64xf32>
    %24 = tpu.matmul %22, %23, %cst_16 {dimension_numbers = #tpu.dot_dimension_numbers<[1], [0], [0], [1], [0, 0, 1, 1], [], []>} : vector<8x128xf32>, vector<128x64xf32>, vector<8x64xf32> -> vector<8x64xf32>
    %c0_17 = arith.constant 0 : index
    %c0_18 = arith.constant 0 : index
    %25 = vector.load %arg7[%c0_17, %c0_18] : memref<1x64xf32, #tpu.memory_space<vmem>>, vector<1x64xf32>
    %26 = vector.broadcast %25 : vector<1x64xf32> to vector<8x64xf32>
    %27 = arith.addf %24, %26 : vector<8x64xf32>
    %cst_19 = arith.constant 0.000000e+00 : f32
    %28 = vector.broadcast %cst_19 : f32 to vector<8x64xf32>
    %29 = arith.subf %28, %27 : vector<8x64xf32>
    %30 = math.exp %29 : vector<8x64xf32>
    %cst_20 = arith.constant 1.000000e+00 : f32
    %31 = vector.broadcast %cst_20 : f32 to vector<8x64xf32>
    %32 = arith.addf %31, %30 : vector<8x64xf32>
    %33 = arith.divf %27, %32 : vector<8x64xf32>
    %c0_21 = arith.constant 0 : index
    %c0_22 = arith.constant 0 : index
    %34 = vector.load %arg8[%c0_21, %c0_22] : memref<64x128xf32, #tpu.memory_space<vmem>>, vector<64x128xf32>
    %cst_23 = arith.constant dense<0.000000e+00> : vector<8x128xf32>
    %35 = tpu.matmul %33, %34, %cst_23 {dimension_numbers = #tpu.dot_dimension_numbers<[1], [0], [0], [1], [0, 0, 1, 1], [], []>} : vector<8x64xf32>, vector<64x128xf32>, vector<8x128xf32> -> vector<8x128xf32>
    %c0_24 = arith.constant 0 : index
    %c0_25 = arith.constant 0 : index
    %36 = vector.load %arg9[%c0_24, %c0_25] : memref<1x128xf32, #tpu.memory_space<vmem>>, vector<1x128xf32>
    %37 = vector.broadcast %36 : vector<1x128xf32> to vector<8x128xf32>
    %38 = arith.addf %35, %37 : vector<8x128xf32>
    %cst_26 = arith.constant 0.000000e+00 : f32
    %39 = vector.broadcast %cst_26 : f32 to vector<8x128xf32>
    %40 = arith.subf %39, %38 : vector<8x128xf32>
    %41 = math.exp %40 : vector<8x128xf32>
    %cst_27 = arith.constant 1.000000e+00 : f32
    %42 = vector.broadcast %cst_27 : f32 to vector<8x128xf32>
    %43 = arith.addf %42, %41 : vector<8x128xf32>
    %44 = arith.divf %38, %43 : vector<8x128xf32>
    %c0_28 = arith.constant 0 : index
    %c0_29 = arith.constant 0 : index
    %45 = vector.load %arg10[%c0_28, %c0_29] : memref<1x128xf32, #tpu.memory_space<vmem>>, vector<1x128xf32>
    %46 = vector.broadcast %45 : vector<1x128xf32> to vector<8x128xf32>
    %47 = arith.mulf %44, %46 : vector<8x128xf32>
    %cst_30 = arith.constant dense<0.000000e+00> : vector<8xf32>
    %48 = vector.multi_reduction <add>, %47, %cst_30 [1] : vector<8x128xf32> to vector<8xf32>
    %49 = vector.shape_cast %48 : vector<8xf32> to vector<8x1xf32>
    %c0_31 = arith.constant 0 : index
    %c0_32 = arith.constant 0 : index
    %50 = vector.load %arg11[%c0_31, %c0_32] : memref<1x1xf32, #tpu.memory_space<vmem>>, vector<1x1xf32>
    %51 = vector.broadcast %50 : vector<1x1xf32> to vector<8x1xf32>
    %52 = arith.addf %49, %51 : vector<8x1xf32>
    %53 = tpu.iota {dimensions = array<i32: 1>} : vector<8x128xi32>
    %c32_i32 = arith.constant 32 : i32
    %54 = vector.broadcast %c32_i32 : i32 to vector<8x128xi32>
    %55 = arith.cmpi slt, %53, %54 : vector<8x128xi32>
    %56 = vector.shape_cast %52 : vector<8x1xf32> to vector<8x1xf32>
    %57 = vector.broadcast %56 : vector<8x1xf32> to vector<8x128xf32>
    %58 = arith.select %55, %44, %57 : vector<8x128xi1>, vector<8x128xf32>
    %c0_33 = arith.constant 0 : index
    %c0_34 = arith.constant 0 : index
    %59 = vector.load %arg12[%c0_33, %c0_34] : memref<8x128xf32, #tpu.memory_space<vmem>>, vector<8x128xf32>
    tpu.vector_store %arg12[%c0_33, %c0_34], %58 {strides = array<i32>} : memref<8x128xf32, #tpu.memory_space<vmem>>, vector<8x128xf32>,
    return
  }
  func.func @transform_0(%arg0: i32) -> (i32, i32) {
    %c0_i32 = arith.constant 0 : i32
    %c0_i32_0 = arith.constant 0 : i32
    return %arg0, %c0_i32 : i32, i32
  }
  func.func @transform_1(%arg0: i32) -> (i32, i32) {
    %c0_i32 = arith.constant 0 : i32
    %c0_i32_0 = arith.constant 0 : i32
    %c0_i32_1 = arith.constant 0 : i32
    return %c0_i32, %c0_i32_0 : i32, i32
  }
  func.func @transform_2(%arg0: i32) -> (i32, i32) {
    %c0_i32 = arith.constant 0 : i32
    %c0_i32_0 = arith.constant 0 : i32
    %c0_i32_1 = arith.constant 0 : i32
    return %c0_i32, %c0_i32_0 : i32, i32
  }
  func.func @transform_3(%arg0: i32) -> (i32, i32) {
    %c0_i32 = arith.constant 0 : i32
    %c0_i32_0 = arith.constant 0 : i32
    %c0_i32_1 = arith.constant 0 : i32
    return %c0_i32, %c0_i32_0 : i32, i32
  }
  func.func @transform_4(%arg0: i32) -> (i32, i32) {
    %c0_i32 = arith.constant 0 : i32
    %c0_i32_0 = arith.constant 0 : i32
    %c0_i32_1 = arith.constant 0 : i32
    return %c0_i32, %c0_i32_0 : i32, i32
  }
  func.func @transform_5(%arg0: i32) -> (i32, i32) {
    %c0_i32 = arith.constant 0 : i32
    %c0_i32_0 = arith.constant 0 : i32
    %c0_i32_1 = arith.constant 0 : i32
    return %c0_i32, %c0_i32_0 : i32, i32
  }
  func.func @transform_6(%arg0: i32) -> (i32, i32) {
    %c0_i32 = arith.constant 0 : i32
    %c0_i32_0 = arith.constant 0 : i32
    %c0_i32_1 = arith.constant 0 : i32
    return %c0_i32, %c0_i32_0 : i32, i32
  }
  func.func @transform_7(%arg0: i32) -> (i32, i32) {
    %c0_i32 = arith.constant 0 : i32
    %c0_i32_0 = arith.constant 0 : i32
    %c0_i32_1 = arith.constant 0 : i32
    return %c0_i32, %c0_i32_0 : i32, i32
  }
  func.func @transform_8(%arg0: i32) -> (i32, i32) {
    %c0_i32 = arith.constant 0 : i32
    %c0_i32_0 = arith.constant 0 : i32
    %c0_i32_1 = arith.constant 0 : i32
    return %c0_i32, %c0_i32_0 : i32, i32
  }
  func.func @transform_9(%arg0: i32) -> (i32, i32) {
    %c0_i32 = arith.constant 0 : i32
    %c0_i32_0 = arith.constant 0 : i32
    %c0_i32_1 = arith.constant 0 : i32
    return %c0_i32, %c0_i32_0 : i32, i32
  }
  func.func @transform_10(%arg0: i32) -> (i32, i32) {
    %c0_i32 = arith.constant 0 : i32
    %c0_i32_0 = arith.constant 0 : i32
    %c0_i32_1 = arith.constant 0 : i32
    return %c0_i32, %c0_i32_0 : i32, i32
  }
  func.func @transform_11(%arg0: i32) -> (i32, i32) {
    %c0_i32 = arith.constant 0 : i32
    %c0_i32_0 = arith.constant 0 : i32
    return %arg0, %c0_i32 : i32, i32
  }
}

</mosaic_0001>

<llo_original>
// kernel: pathnet_paep_forward.1
$region0: #{pathnet_paep_forward.1}
  #allocation0 [shape = 'u32[]', space=smem, size = 0x4, offset = 0x4, fixed_abs, tag = 'smem constant byte address 0x4 - core index']
  #allocation1 [shape = 'u32[144,128]{1,0:T(1,128)}', space=vmem, size = 0x12000, scoped, tag = 'internal scratch']
  #allocation2 [shape = 'f32[1,1]{1,0:T(1,128)S(1)}', space=vmem, size = 0x200, scoped, tag = 'scoped memory for pathnet_paep_forward.1']
  %s0 = inlined_call_operand.vmem [shape: f32[8,290], index: 0, kind: input, shape index: {}]
  %s1 = inlined_call_operand.hbm [shape: f32[290,256], index: 1, kind: input, shape index: {}]
  %s2 = inlined_call_operand.vmem [shape: f32[1,256], index: 2, kind: input, shape index: {}]
  %s3 = inlined_call_operand.vmem [shape: f32[256,128], index: 3, kind: input, shape index: {}]
  %s4 = inlined_call_operand.vmem [shape: f32[1,128], index: 4, kind: input, shape index: {}]
  %s5 = inlined_call_operand.vmem [shape: f32[128,64], index: 5, kind: input, shape index: {}]
  %s6 = inlined_call_operand.vmem [shape: f32[1,64], index: 6, kind: input, shape index: {}]
  %s7 = inlined_call_operand.vmem [shape: f32[64,128], index: 7, kind: input, shape index: {}]
  %s8 = inlined_call_operand.vmem [shape: f32[1,128], index: 8, kind: input, shape index: {}]
  %s9 = inlined_call_operand.vmem [shape: f32[1,128], index: 9, kind: input, shape index: {}]
  %s10 = inlined_call_operand.<no memory space> [shape: f32[1,1], index: 10, kind: input, shape index: {}]
  %s11 = inlined_call_operand.vmem [shape: f32[8,128], index: 11, kind: output, shape index: {}]
  %s12 = sld [smem:[#allocation0]]
  $region58: #{pathnet_paep_forward.1} parent=0
    _
  %s14 = ssub.s32 1, %s12
  %s15 = scalar_select 0, %s14, %s12
  %v16 = vstv %s10
  %17 = vst [vmem:[#allocation2] sm:$0x1] %v16
  $region1: #{pathnet_paep_forward.1} parent=0
    #allocation3 [shape = 'u8[303104]{0}', space=vmem, size = 0x4a000, scoped, tag = 'input window, operand 1, single buffered']
    #allocation4 [shape = 's32[1]{0}', space=sflag, size = 0x4, scoped, tag = 'scoped memory for pathnet_paep_forward.1']
    %18 = vsyncpa [#allocation4], 0
    // Predicated region
    $region2: #{pathnet_paep_forward.1} parent=1 // pred_check
      _
    $region3: #{pathnet_paep_forward.1} parent=1 // pred_check_branch
      %20 = sbr.rel (0) target = $region5
    $region4: #{pathnet_paep_forward.1} parent=1 // pred_region
      _
    $region5: #{pathnet_paep_forward.1} parent=1 // pred_fallthru
      _
    // Predicated region
    $region6: #{pathnet_paep_forward.1} parent=1 // pred_check
      _
    $region7: #{pathnet_paep_forward.1} parent=1 // pred_check_branch
      %22 = sbr.rel (0) target = $region9
    $region8: #{pathnet_paep_forward.1} parent=1 // pred_region
      %s24 = ssub.s32 9472, 9472
      %25 = vsyncadd [#allocation4], %s24
      %s26 = sshll.u32 [#allocation3], 4
      %s27 = int_to_ptr.vmem [resolvable:$true] %s26
      %32 = dma.hbm_to_vmem [thread:$0]  %s1, 9472, %s27, [#allocation4], 256, 256, 16
    $region9: #{pathnet_paep_forward.1} parent=1 // pred_fallthru
      _
    // Predicated region
    $region10: #{pathnet_paep_forward.1} parent=1 // pred_check
      _
    $region11: #{pathnet_paep_forward.1} parent=1 // pred_check_branch
      %34 = sbr.rel (0) target = $region13
    $region12: #{pathnet_paep_forward.1} parent=1 // pred_region
      _
    $region13: #{pathnet_paep_forward.1} parent=1 // pred_fallthru
      _
    // Predicated region
    $region14: #{pathnet_paep_forward.1} parent=1 // pred_check
      _
    $region15: #{pathnet_paep_forward.1} parent=1 // pred_check_branch
      %36 = sbr.rel (0) target = $region17
    $region16: #{pathnet_paep_forward.1} parent=1 // pred_region
      _
    $region17: #{pathnet_paep_forward.1} parent=1 // pred_fallthru
      _
    // Predicated region
    $region18: #{pathnet_paep_forward.1} parent=1 // pred_check
      _
    $region19: #{pathnet_paep_forward.1} parent=1 // pred_check_branch
      %38 = sbr.rel (0) target = $region21
    $region20: #{pathnet_paep_forward.1} parent=1 // pred_region
      _
    $region21: #{pathnet_paep_forward.1} parent=1 // pred_fallthru
      _
    // Predicated region
    $region22: #{pathnet_paep_forward.1} parent=1 // pred_check
      _
    $region23: #{pathnet_paep_forward.1} parent=1 // pred_check_branch
      %40 = sbr.rel (0) target = $region25
    $region24: #{pathnet_paep_forward.1} parent=1 // pred_region
      _
    $region25: #{pathnet_paep_forward.1} parent=1 // pred_fallthru
      _
    // Predicated region
    $region26: #{pathnet_paep_forward.1} parent=1 // pred_check
      _
    $region27: #{pathnet_paep_forward.1} parent=1 // pred_check_branch
      %42 = sbr.rel (0) target = $region29
    $region28: #{pathnet_paep_forward.1} parent=1 // pred_region
      _
    $region29: #{pathnet_paep_forward.1} parent=1 // pred_fallthru
      _
    // Predicated region
    $region30: #{pathnet_paep_forward.1} parent=1 // pred_check
      _
    $region31: #{pathnet_paep_forward.1} parent=1 // pred_check_branch
      %44 = sbr.rel (0) target = $region33
    $region32: #{pathnet_paep_forward.1} parent=1 // pred_region
      _
    $region33: #{pathnet_paep_forward.1} parent=1 // pred_fallthru
      _
    // Predicated region
    $region34: #{pathnet_paep_forward.1} parent=1 // pred_check
      _
    $region35: #{pathnet_paep_forward.1} parent=1 // pred_check_branch
      %46 = sbr.rel (0) target = $region37
    $region36: #{pathnet_paep_forward.1} parent=1 // pred_region
      _
    $region37: #{pathnet_paep_forward.1} parent=1 // pred_fallthru
      _
    // Predicated region
    $region38: #{pathnet_paep_forward.1} parent=1 // pred_check
      _
    $region39: #{pathnet_paep_forward.1} parent=1 // pred_check_branch
      %48 = sbr.rel (0) target = $region41
    $region40: #{pathnet_paep_forward.1} parent=1 // pred_region
      _
    $region41: #{pathnet_paep_forward.1} parent=1 // pred_fallthru
      _
    // Predicated region
    $region42: #{pathnet_paep_forward.1} parent=1 // pred_check
      _
    $region43: #{pathnet_paep_forward.1} parent=1 // pred_check_branch
      %50 = sbr.rel (0) target = $region45
    $region44: #{pathnet_paep_forward.1} parent=1 // pred_region
      _
    $region45: #{pathnet_paep_forward.1} parent=1 // pred_fallthru
      _
    // Predicated region
    $region46: #{pathnet_paep_forward.1} parent=1 // pred_check
      _
    $region47: #{pathnet_paep_forward.1} parent=1 // pred_check_branch
      %52 = sbr.rel (0) target = $region49
    $region48: #{pathnet_paep_forward.1} parent=1 // pred_region
      %53 = dma.done [#allocation4], 9472
    $region49: #{pathnet_paep_forward.1} parent=1 // pred_fallthru
      _
    %v54 = vld [vmem:[%s0] sm:$0xff]
    %v55 = vld [vmem:[%s0 + $0x8] sm:$0xff]
    %v56 = vld [vmem:[%s0 + $0x10] sm:$0xff]
    %v57 = vld [vmem:[#allocation3] sm:$0xff]
    %v58 = vld [vmem:[#allocation3 + $0x8] sm:$0xff]
    %v59 = vld [vmem:[#allocation3 + $0x10] sm:$0xff]
    %v60 = vld [vmem:[#allocation3 + $0x18] sm:$0xff]
    %v61 = vld [vmem:[#allocation3 + $0x20] sm:$0xff]
    %v62 = vld [vmem:[#allocation3 + $0x28] sm:$0xff]
    %v63 = vld [vmem:[#allocation3 + $0x30] sm:$0xff]
    %v64 = vld [vmem:[#allocation3 + $0x38] sm:$0xff]
    %v65 = vld [vmem:[#allocation3 + $0x40] sm:$0xff]
    %v66 = vld [vmem:[#allocation3 + $0x48] sm:$0xff]
    %v67 = vld [vmem:[#allocation3 + $0x50] sm:$0xff]
    %v68 = vld [vmem:[#allocation3 + $0x58] sm:$0xff]
    %v69 = vld [vmem:[#allocation3 + $0x60] sm:$0xff]
    %v70 = vld [vmem:[#allocation3 + $0x68] sm:$0xff]
    %v71 = vld [vmem:[#allocation3 + $0x70] sm:$0xff]
    %v72 = vld [vmem:[#allocation3 + $0x78] sm:$0xff]
    %v73 = vld [vmem:[#allocation3 + $0x80] sm:$0xff]
    %v74 = vld [vmem:[#allocation3 + $0x88] sm:$0xff]
    %v75 = vld [vmem:[#allocation3 + $0x90] sm:$0xff]
    %v76 = vld [vmem:[#allocation3 + $0x98] sm:$0xff]
    %v77 = vld [vmem:[#allocation3 + $0xa0] sm:$0xff]
    %v78 = vld [vmem:[#allocation3 + $0xa8] sm:$0xff]
    %v79 = vld [vmem:[#allocation3 + $0xb0] sm:$0xff]
    %v80 = vld [vmem:[#allocation3 + $0xb8] sm:$0xff]
    %v81 = vld [vmem:[#allocation3 + $0xc0] sm:$0xff]
    %v82 = vld [vmem:[#allocation3 + $0xc8] sm:$0xff]
    %v83 = vld [vmem:[#allocation3 + $0xd0] sm:$0xff]
    %v84 = vld [vmem:[#allocation3 + $0xd8] sm:$0xff]
    %v85 = vld [vmem:[#allocation3 + $0xe0] sm:$0xff]
    %v86 = vld [vmem:[#allocation3 + $0xe8] sm:$0xff]
    %v87 = vld [vmem:[#allocation3 + $0xf0] sm:$0xff]
    %v88 = vld [vmem:[#allocation3 + $0xf8] sm:$0xff]
    %v89 = vld [vmem:[#allocation3 + $0x100] sm:$0xff]
    %v90 = vld [vmem:[#allocation3 + $0x108] sm:$0xff]
    %v91 = vld [vmem:[#allocation3 + $0x110] sm:$0xff]
    %v92 = vld [vmem:[#allocation3 + $0x118] sm:$0xff]
    %v93 = vld [vmem:[#allocation3 + $0x120] sm:$0xff]
    %v94 = vld [vmem:[#allocation3 + $0x128] sm:$0xff]
    %v95 = vld [vmem:[#allocation3 + $0x130] sm:$0xff]
    %v96 = vld [vmem:[#allocation3 + $0x138] sm:$0xff]
    %v97 = vld [vmem:[#allocation3 + $0x140] sm:$0xff]
    %v98 = vld [vmem:[#allocation3 + $0x148] sm:$0xff]
    %v99 = vld [vmem:[#allocation3 + $0x150] sm:$0xff]
    %v100 = vld [vmem:[#allocation3 + $0x158] sm:$0xff]
    %v101 = vld [vmem:[#allocation3 + $0x160] sm:$0xff]
    %v102 = vld [vmem:[#allocation3 + $0x168] sm:$0xff]
    %v103 = vld [vmem:[#allocation3 + $0x170] sm:$0xff]
    %v104 = vld [vmem:[#allocation3 + $0x178] sm:$0xff]
    %v105 = vld [vmem:[#allocation3 + $0x180] sm:$0xff]
    %v106 = vld [vmem:[#allocation3 + $0x188] sm:$0xff]
    %v107 = vld [vmem:[#allocation3 + $0x190] sm:$0xff]
    %v108 = vld [vmem:[#allocation3 + $0x198] sm:$0xff]
    %v109 = vld [vmem:[#allocation3 + $0x1a0] sm:$0xff]
    %v110 = vld [vmem:[#allocation3 + $0x1a8] sm:$0xff]
    %v111 = vld [vmem:[#allocation3 + $0x1b0] sm:$0xff]
    %v112 = vld [vmem:[#allocation3 + $0x1b8] sm:$0xff]
    %v113 = vld [vmem:[#allocation3 + $0x1c0] sm:$0xff]
    %v114 = vld [vmem:[#allocation3 + $0x1c8] sm:$0xff]
    %v115 = vld [vmem:[#allocation3 + $0x1d0] sm:$0xff]
    %v116 = vld [vmem:[#allocation3 + $0x1d8] sm:$0xff]
    %v117 = vld [vmem:[#allocation3 + $0x1e0] sm:$0xff]
    %v118 = vld [vmem:[#allocation3 + $0x1e8] sm:$0xff]
    %v119 = vld [vmem:[#allocation3 + $0x1f0] sm:$0xff]
    %v120 = vld [vmem:[#allocation3 + $0x1f8] sm:$0xff]
    %v121 = vld [vmem:[#allocation3 + $0x200] sm:$0xff]
    %v122 = vld [vmem:[#allocation3 + $0x208] sm:$0xff]
    %v123 = vld [vmem:[#allocation3 + $0x210] sm:$0xff]
    %v124 = vld [vmem:[#allocation3 + $0x218] sm:$0xff]
    %v125 = vld [vmem:[#allocation3 + $0x220] sm:$0xff]
    %v126 = vld [vmem:[#allocation3 + $0x228] sm:$0xff]
    %v127 = vld [vmem:[#allocation3 + $0x230] sm:$0xff]
    %v128 = vld [vmem:[#allocation3 + $0x238] sm:$0xff]
    %v129 = vld [vmem:[#allocation3 + $0x240] sm:$0x3]
    %v130 = vld [vmem:[#allocation3 + $0x248] sm:$0x3]
    %v131 = vld [vmem:[%s2] sm:$0x3]
    %v133 = vlaneseq
    %v134 = vshrl.u32 %v133, 7
    %v135 = vsub.s32 0, %v134
    %v136 = vrot.slane %v131, %v135
    %v137 = vlaneseq
    %v138 = vshrl.u32 %v137, 7
    %v139 = vsub.s32 1, %v138
    %v140 = vrot.slane %v131, %v139
    %vm143 = vcmask 277504
    %v145 = vsel %vm143, %v56, 0
    %vm147 = vcmask 1041408
    %v149 = vsel %vm147, %v129, 0
    %v152 = vsel %vm147, %v130, 0
    %154 = vmatprep.subr.mxu0 %v58
    %155 = vmatpush1.msra.mxu0 %v57
    %156 = vmatprep.subr.mxu0 %v60
    %157 = vmatpush1.msra.mxu0 %v59
    %158 = vmatprep.subr.mxu0 %v62
    %159 = vmatpush1.msra.mxu0 %v61
    %160 = vmatprep.subr.mxu0 %v64
    %161 = vmatpush1.msra.mxu0 %v63
    %162 = vmatprep.subr.mxu0 %v66
    %163 = vmatpush1.msra.mxu0 %v65
    %164 = vmatprep.subr.mxu0 %v68
    %165 = vmatpush1.msra.mxu0 %v67
    %166 = vmatprep.subr.mxu0 %v70
    %167 = vmatpush1.msra.mxu0 %v69
    %168 = vmatprep.subr.mxu0 %v72
    %169 = vmatpush1.msra.mxu0 %v71
    %170 = vmatprep.subr.mxu0 %v74
    %171 = vmatpush1.msra.mxu0 %v73
    %172 = vmatprep.subr.mxu0 %v76
    %173 = vmatpush1.msra.mxu0 %v75
    %174 = vmatprep.subr.mxu0 %v78
    %175 = vmatpush1.msra.mxu0 %v77
    %176 = vmatprep.subr.mxu0 %v80
    %177 = vmatpush1.msra.mxu0 %v79
    %178 = vmatprep.subr.mxu0 %v82
    %179 = vmatpush1.msra.mxu0 %v81
    %180 = vmatprep.subr.mxu0 %v84
    %181 = vmatpush1.msra.mxu0 %v83
    %182 = vmatprep.subr.mxu0 %v86
    %183 = vmatpush1.msra.mxu0 %v85
    %184 = vmatprep.subr.mxu0 %v88
    %185 = vmatpush1.msra.mxu0 %v87
    %186 = vmatprep.subr.mxu0 %v90
    %187 = vmatpush1.msra.mxu0 %v89
    %188 = vmatprep.subr.mxu0 %v92
    %189 = vmatpush1.msra.mxu0 %v91
    %190 = vmatprep.subr.mxu0 %v94
    %191 = vmatpush1.msra.mxu0 %v93
    %192 = vmatprep.subr.mxu0 %v96
    %193 = vmatpush1.msra.mxu0 %v95
    %194 = vmatprep.subr.mxu0 %v98
    %195 = vmatpush1.msra.mxu0 %v97
    %196 = vmatprep.subr.mxu0 %v100
    %197 = vmatpush1.msra.mxu0 %v99
    %198 = vmatprep.subr.mxu0 %v102
    %199 = vmatpush1.msra.mxu0 %v101
    %200 = vmatprep.subr.mxu0 %v104
    %201 = vmatpush1.msra.mxu0 %v103
    %202 = vmatprep.subr.mxu0 %v106
    %203 = vmatpush1.msra.mxu0 %v105
    %204 = vmatprep.subr.mxu0 %v108
    %205 = vmatpush1.msra.mxu0 %v107
    %206 = vmatprep.subr.mxu0 %v110
    %207 = vmatpush1.msra.mxu0 %v109
    %208 = vmatprep.subr.mxu0 %v112
    %209 = vmatpush1.msra.mxu0 %v111
    %210 = vmatprep.subr.mxu0 %v114
    %211 = vmatpush1.msra.mxu0 %v113
    %212 = vmatprep.subr.mxu0 %v116
    %213 = vmatpush1.msra.mxu0 %v115
    %214 = vmatprep.subr.mxu0 %v118
    %215 = vmatpush1.msra.mxu0 %v117
    %216 = vmatprep.subr.mxu0 %v120
    %217 = vmatpush1.msra.mxu0 %v119
    %218 = vmatprep.mubr.f32.mxu0 %v55
    %219 = vmatmul.mubr.f32.gmra.mrb[0].mxu0 %v54
    %v220 = vpop.f32.mrb[0].mxu0
    %v221 = vadd.f32 %v136, %v220
    %v222 = vpop.f32.mrb[0].mxu0
    %v223 = vadd.f32 %v140, %v222
    %224 = vdwg.mxu0
    %225 = vmatprep.subr.mxu0 %v122
    %226 = vmatpush1.msra.mxu0 %v121
    %227 = vmatprep.subr.mxu0 %v124
    %228 = vmatpush1.msra.mxu0 %v123
    %229 = vmatprep.subr.mxu0 %v126
    %230 = vmatpush1.msra.mxu0 %v125
    %231 = vmatprep.subr.mxu0 %v128
    %232 = vmatpush1.msra.mxu0 %v127
    %233 = vmatprep.subr.mxu0 %v152
    %234 = vmatpush1.msra.mxu0 %v149
    %235 = vmatprep.subr.mxu0 0.0
    %236 = vmatpush1.msra.mxu0 0.0
    %237 = vmatprep.subr.mxu0 0.0
    %238 = vmatpush1.msra.mxu0 0.0
    %239 = vmatprep.subr.mxu0 0.0
    %240 = vmatpush1.msra.mxu0 0.0
    %241 = vmatprep.subr.mxu0 0.0
    %242 = vmatpush1.msra.mxu0 0.0
    %243 = vmatprep.subr.mxu0 0.0
    %244 = vmatpush1.msra.mxu0 0.0
    %245 = vmatprep.subr.mxu0 0.0
    %246 = vmatpush1.msra.mxu0 0.0
    %247 = vmatprep.subr.mxu0 0.0
    %248 = vmatpush1.msra.mxu0 0.0
    %249 = vmatprep.subr.mxu0 0.0
    %250 = vmatpush1.msra.mxu0 0.0
    %251 = vmatprep.subr.mxu0 0.0
    %252 = vmatpush1.msra.mxu0 0.0
    %253 = vmatprep.subr.mxu0 0.0
    %254 = vmatpush1.msra.mxu0 0.0
    %255 = vmatprep.subr.mxu0 0.0
    %256 = vmatpush1.msra.mxu0 0.0
    %257 = vmatprep.subr.mxu0 0.0
    %258 = vmatpush1.msra.mxu0 0.0
    %259 = vmatprep.subr.mxu0 0.0
    %260 = vmatpush1.msra.mxu0 0.0
    %261 = vmatprep.subr.mxu0 0.0
    %262 = vmatpush1.msra.mxu0 0.0
    %263 = vmatprep.subr.mxu0 0.0
    %264 = vmatpush1.msra.mxu0 0.0
    %265 = vmatprep.subr.mxu0 0.0
    %266 = vmatpush1.msra.mxu0 0.0
    %267 = vmatprep.subr.mxu0 0.0
    %268 = vmatpush1.msra.mxu0 0.0
    %269 = vmatprep.subr.mxu0 0.0
    %270 = vmatpush1.msra.mxu0 0.0
    %271 = vmatprep.subr.mxu0 0.0
    %272 = vmatpush1.msra.mxu0 0.0
    %273 = vmatprep.subr.mxu0 0.0
    %274 = vmatpush1.msra.mxu0 0.0
    %275 = vmatprep.subr.mxu0 0.0
    %276 = vmatpush1.msra.mxu0 0.0
    %277 = vmatprep.subr.mxu0 0.0
    %278 = vmatpush1.msra.mxu0 0.0
    %279 = vmatprep.subr.mxu0 0.0
    %280 = vmatpush1.msra.mxu0 0.0
    %281 = vmatprep.subr.mxu0 0.0
    %282 = vmatpush1.msra.mxu0 0.0
    %283 = vmatprep.subr.mxu0 0.0
    %284 = vmatpush1.msra.mxu0 0.0
    %285 = vmatprep.subr.mxu0 0.0
    %286 = vmatpush1.msra.mxu0 0.0
    %287 = vmatprep.subr.mxu0 0.0
    %288 = vmatpush1.msra.mxu0 0.0
    %289 = vmatprep.mubr.f32.mxu0 0.0
    %290 = vmatmul.mubr.f32.gmra.mrb[0].mxu0 %v145
    %v291 = vpop.f32.mrb[0].mxu0
    %v292 = vadd.f32 %v221, %v291
    %v293 = vpop.f32.mrb[0].mxu0
    %v294 = vadd.f32 %v223, %v293
    %295 = vdwg.mxu0
    %v296 = vsub.f32 0.0, %v292
    %v297 = vsub.f32 0.0, %v294
    %v298 = vmul.f32 %v296, 1.442695
    %v299 = vpow.pop %v298
    %v300 = vmul.f32 %v297, 1.442695
    %v301 = vpow.pop %v300
    %v302 = vadd.f32 %v299, 1.0
    %v303 = vadd.f32 %v301, 1.0
    %v304 = vrcp.pop %v302
    %v305 = vmul.f32 %v292, %v304
    %v306 = vrcp.pop %v303
    %v307 = vmul.f32 %v294, %v306
    %v308 = vld [vmem:[%s3] sm:$0xff]
    %v309 = vld [vmem:[%s3 + $0x8] sm:$0xff]
    %v310 = vld [vmem:[%s3 + $0x10] sm:$0xff]
    %v311 = vld [vmem:[%s3 + $0x18] sm:$0xff]
    %v312 = vld [vmem:[%s3 + $0x20] sm:$0xff]
    %v313 = vld [vmem:[%s3 + $0x28] sm:$0xff]
    %v314 = vld [vmem:[%s3 + $0x30] sm:$0xff]
    %v315 = vld [vmem:[%s3 + $0x38] sm:$0xff]
    %v316 = vld [vmem:[%s3 + $0x40] sm:$0xff]
    %v317 = vld [vmem:[%s3 + $0x48] sm:$0xff]
    %v318 = vld [vmem:[%s3 + $0x50] sm:$0xff]
    %v319 = vld [vmem:[%s3 + $0x58] sm:$0xff]
    %v320 = vld [vmem:[%s3 + $0x60] sm:$0xff]
    %v321 = vld [vmem:[%s3 + $0x68] sm:$0xff]
    %v322 = vld [vmem:[%s3 + $0x70] sm:$0xff]
    %v323 = vld [vmem:[%s3 + $0x78] sm:$0xff]
    %v324 = vld [vmem:[%s3 + $0x80] sm:$0xff]
    %v325 = vld [vmem:[%s3 + $0x88] sm:$0xff]
    %v326 = vld [vmem:[%s3 + $0x90] sm:$0xff]
    %v327 = vld [vmem:[%s3 + $0x98] sm:$0xff]
    %v328 = vld [vmem:[%s3 + $0xa0] sm:$0xff]
    %v329 = vld [vmem:[%s3 + $0xa8] sm:$0xff]
    %v330 = vld [vmem:[%s3 + $0xb0] sm:$0xff]
    %v331 = vld [vmem:[%s3 + $0xb8] sm:$0xff]
    %v332 = vld [vmem:[%s3 + $0xc0] sm:$0xff]
    %v333 = vld [vmem:[%s3 + $0xc8] sm:$0xff]
    %v334 = vld [vmem:[%s3 + $0xd0] sm:$0xff]
    %v335 = vld [vmem:[%s3 + $0xd8] sm:$0xff]
    %v336 = vld [vmem:[%s3 + $0xe0] sm:$0xff]
    %v337 = vld [vmem:[%s3 + $0xe8] sm:$0xff]
    %v338 = vld [vmem:[%s3 + $0xf0] sm:$0xff]
    %v339 = vld [vmem:[%s3 + $0xf8] sm:$0xff]
    %v340 = vld [vmem:[%s4] sm:$0x1]
    %v342 = vlaneseq
    %v343 = vshrl.u32 %v342, 7
    %v344 = vsub.s32 0, %v343
    %v345 = vrot.slane %v340, %v344
    %347 = vmatprep.subr.mxu0 0.0
    %348 = vmatpush1.msra.mxu0 %v308
    %349 = vmatprep.subr.mxu0 0.0
    %350 = vmatpush1.msra.mxu0 %v309
    %351 = vmatprep.subr.mxu0 0.0
    %352 = vmatpush1.msra.mxu0 %v310
    %353 = vmatprep.subr.mxu0 0.0
    %354 = vmatpush1.msra.mxu0 %v311
    %355 = vmatprep.subr.mxu0 0.0
    %356 = vmatpush1.msra.mxu0 %v312
    %357 = vmatprep.subr.mxu0 0.0
    %358 = vmatpush1.msra.mxu0 %v313
    %359 = vmatprep.subr.mxu0 0.0
    %360 = vmatpush1.msra.mxu0 %v314
    %361 = vmatprep.subr.mxu0 0.0
    %362 = vmatpush1.msra.mxu0 %v315
    %363 = vmatprep.subr.mxu0 0.0
    %364 = vmatpush1.msra.mxu0 %v316
    %365 = vmatprep.subr.mxu0 0.0
    %366 = vmatpush1.msra.mxu0 %v317
    %367 = vmatprep.subr.mxu0 0.0
    %368 = vmatpush1.msra.mxu0 %v318
    %369 = vmatprep.subr.mxu0 0.0
    %370 = vmatpush1.msra.mxu0 %v319
    %371 = vmatprep.subr.mxu0 0.0
    %372 = vmatpush1.msra.mxu0 %v320
    %373 = vmatprep.subr.mxu0 0.0
    %374 = vmatpush1.msra.mxu0 %v321
    %375 = vmatprep.subr.mxu0 0.0
    %376 = vmatpush1.msra.mxu0 %v322
    %377 = vmatprep.subr.mxu0 0.0
    %378 = vmatpush1.msra.mxu0 %v323
    %379 = vmatprep.subr.mxu0 0.0
    %380 = vmatpush1.msra.mxu0 %v324
    %381 = vmatprep.subr.mxu0 0.0
    %382 = vmatpush1.msra.mxu0 %v325
    %383 = vmatprep.subr.mxu0 0.0
    %384 = vmatpush1.msra.mxu0 %v326
    %385 = vmatprep.subr.mxu0 0.0
    %386 = vmatpush1.msra.mxu0 %v327
    %387 = vmatprep.subr.mxu0 0.0
    %388 = vmatpush1.msra.mxu0 %v328
    %389 = vmatprep.subr.mxu0 0.0
    %390 = vmatpush1.msra.mxu0 %v329
    %391 = vmatprep.subr.mxu0 0.0
    %392 = vmatpush1.msra.mxu0 %v330
    %393 = vmatprep.subr.mxu0 0.0
    %394 = vmatpush1.msra.mxu0 %v331
    %395 = vmatprep.subr.mxu0 0.0
    %396 = vmatpush1.msra.mxu0 %v332
    %397 = vmatprep.subr.mxu0 0.0
    %398 = vmatpush1.msra.mxu0 %v333
    %399 = vmatprep.subr.mxu0 0.0
    %400 = vmatpush1.msra.mxu0 %v334
    %401 = vmatprep.subr.mxu0 0.0
    %402 = vmatpush1.msra.mxu0 %v335
    %403 = vmatprep.subr.mxu0 0.0
    %404 = vmatpush1.msra.mxu0 %v336
    %405 = vmatprep.subr.mxu0 0.0
    %406 = vmatpush1.msra.mxu0 %v337
    %407 = vmatprep.subr.mxu0 0.0
    %408 = vmatpush1.msra.mxu0 %v338
    %409 = vmatprep.subr.mxu0 0.0
    %410 = vmatpush1.msra.mxu0 %v339
    %411 = vmatprep.mubr.f32.mxu0 %v307
    %412 = vmatmul.mubr.f32.gmra.mrb[0].mxu0 %v305
    %v413 = vpop.f32.mrb[0].mxu0
    %v414 = vadd.f32 %v345, %v413
    %v415 = vpop.f32.mrb[0].mxu0
    %416 = vdwg.mxu0
    %v417 = vsub.f32 0.0, %v414
    %v418 = vmul.f32 %v417, 1.442695
    %v419 = vpow.pop %v418
    %v420 = vadd.f32 %v419, 1.0
    %v421 = vrcp.pop %v420
    %v422 = vmul.f32 %v414, %v421
    %v423 = vld [vmem:[%s5] sm:$0xff]
    %v424 = vld [vmem:[%s5 + $0x8] sm:$0xff]
    %v425 = vld [vmem:[%s5 + $0x10] sm:$0xff]
    %v426 = vld [vmem:[%s5 + $0x18] sm:$0xff]
    %v427 = vld [vmem:[%s5 + $0x20] sm:$0xff]
    %v428 = vld [vmem:[%s5 + $0x28] sm:$0xff]
    %v429 = vld [vmem:[%s5 + $0x30] sm:$0xff]
    %v430 = vld [vmem:[%s5 + $0x38] sm:$0xff]
    %v431 = vld [vmem:[%s5 + $0x40] sm:$0xff]
    %v432 = vld [vmem:[%s5 + $0x48] sm:$0xff]
    %v433 = vld [vmem:[%s5 + $0x50] sm:$0xff]
    %v434 = vld [vmem:[%s5 + $0x58] sm:$0xff]
    %v435 = vld [vmem:[%s5 + $0x60] sm:$0xff]
    %v436 = vld [vmem:[%s5 + $0x68] sm:$0xff]
    %v437 = vld [vmem:[%s5 + $0x70] sm:$0xff]
    %v438 = vld [vmem:[%s5 + $0x78] sm:$0xff]
    %v439 = vld [vmem:[%s6] sm:$0x1]
    %v441 = vlaneseq
    %v442 = vshrl.u32 %v441, 7
    %v443 = vsub.s32 0, %v442
    %v444 = vrot.slane %v439, %v443
    %446 = vmatprep.subr.mxu0 0.0
    %447 = vmatpush1.msra.mxu0 %v423
    %448 = vmatprep.subr.mxu0 0.0
    %449 = vmatpush1.msra.mxu0 %v424
    %450 = vmatprep.subr.mxu0 0.0
    %451 = vmatpush1.msra.mxu0 %v425
    %452 = vmatprep.subr.mxu0 0.0
    %453 = vmatpush1.msra.mxu0 %v426
    %454 = vmatprep.subr.mxu0 0.0
    %455 = vmatpush1.msra.mxu0 %v427
    %456 = vmatprep.subr.mxu0 0.0
    %457 = vmatpush1.msra.mxu0 %v428
    %458 = vmatprep.subr.mxu0 0.0
    %459 = vmatpush1.msra.mxu0 %v429
    %460 = vmatprep.subr.mxu0 0.0
    %461 = vmatpush1.msra.mxu0 %v430
    %462 = vmatprep.subr.mxu0 0.0
    %463 = vmatpush1.msra.mxu0 %v431
    %464 = vmatprep.subr.mxu0 0.0
    %465 = vmatpush1.msra.mxu0 %v432
    %466 = vmatprep.subr.mxu0 0.0
    %467 = vmatpush1.msra.mxu0 %v433
    %468 = vmatprep.subr.mxu0 0.0
    %469 = vmatpush1.msra.mxu0 %v434
    %470 = vmatprep.subr.mxu0 0.0
    %471 = vmatpush1.msra.mxu0 %v435
    %472 = vmatprep.subr.mxu0 0.0
    %473 = vmatpush1.msra.mxu0 %v436
    %474 = vmatprep.subr.mxu0 0.0
    %475 = vmatpush1.msra.mxu0 %v437
    %476 = vmatprep.subr.mxu0 0.0
    %477 = vmatpush1.msra.mxu0 %v438
    %478 = vmatprep.subr.mxu0 0.0
    %479 = vmatpush1.msra.mxu0 0.0
    %480 = vmatprep.subr.mxu0 0.0
    %481 = vmatpush1.msra.mxu0 0.0
    %482 = vmatprep.subr.mxu0 0.0
    %483 = vmatpush1.msra.mxu0 0.0
    %484 = vmatprep.subr.mxu0 0.0
    %485 = vmatpush1.msra.mxu0 0.0
    %486 = vmatprep.subr.mxu0 0.0
    %487 = vmatpush1.msra.mxu0 0.0
    %488 = vmatprep.subr.mxu0 0.0
    %489 = vmatpush1.msra.mxu0 0.0
    %490 = vmatprep.subr.mxu0 0.0
    %491 = vmatpush1.msra.mxu0 0.0
    %492 = vmatprep.subr.mxu0 0.0
    %493 = vmatpush1.msra.mxu0 0.0
    %494 = vmatprep.subr.mxu0 0.0
    %495 = vmatpush1.msra.mxu0 0.0
    %496 = vmatprep.subr.mxu0 0.0
    %497 = vmatpush1.msra.mxu0 0.0
    %498 = vmatprep.subr.mxu0 0.0
    %499 = vmatpush1.msra.mxu0 0.0
    %500 = vmatprep.subr.mxu0 0.0
    %501 = vmatpush1.msra.mxu0 0.0
    %502 = vmatprep.subr.mxu0 0.0
    %503 = vmatpush1.msra.mxu0 0.0
    %504 = vmatprep.subr.mxu0 0.0
    %505 = vmatpush1.msra.mxu0 0.0
    %506 = vmatprep.subr.mxu0 0.0
    %507 = vmatpush1.msra.mxu0 0.0
    %508 = vmatprep.subr.mxu0 0.0
    %509 = vmatpush1.msra.mxu0 0.0
    %510 = vmatprep.mubr.f32.mxu0 0.0
    %511 = vmatmul.mubr.f32.gmra.mrb[0].mxu0 %v422
    %v512 = vpop.f32.mrb[0].mxu0
    %v513 = vadd.f32 %v444, %v512
    %v514 = vpop.f32.mrb[0].mxu0
    %515 = vdwg.mxu0
    %v516 = vsub.f32 0.0, %v513
    %v517 = vmul.f32 %v516, 1.442695
    %v518 = vpow.pop %v517
    %v519 = vadd.f32 %v518, 1.0
    %v520 = vrcp.pop %v519
    %v521 = vmul.f32 %v513, %v520
    %v522 = vld [vmem:[%s7] sm:$0xff]
    %v523 = vld [vmem:[%s7 + $0x8] sm:$0xff]
    %v524 = vld [vmem:[%s7 + $0x10] sm:$0xff]
    %v525 = vld [vmem:[%s7 + $0x18] sm:$0xff]
    %v526 = vld [vmem:[%s7 + $0x20] sm:$0xff]
    %v527 = vld [vmem:[%s7 + $0x28] sm:$0xff]
    %v528 = vld [vmem:[%s7 + $0x30] sm:$0xff]
    %v529 = vld [vmem:[%s7 + $0x38] sm:$0xff]
    %v530 = vld [vmem:[%s8] sm:$0x1]
    %v532 = vlaneseq
    %v533 = vshrl.u32 %v532, 7
    %v534 = vsub.s32 0, %v533
    %v535 = vrot.slane %v530, %v534
    %vm537 = vcmask 523264
    %v539 = vsel %vm537, %v521, 0
    %541 = vmatprep.subr.mxu0 0.0
    %542 = vmatpush1.msra.mxu0 %v522
    %543 = vmatprep.subr.mxu0 0.0
    %544 = vmatpush1.msra.mxu0 %v523
    %545 = vmatprep.subr.mxu0 0.0
    %546 = vmatpush1.msra.mxu0 %v524
    %547 = vmatprep.subr.mxu0 0.0
    %548 = vmatpush1.msra.mxu0 %v525
    %549 = vmatprep.subr.mxu0 0.0
    %550 = vmatpush1.msra.mxu0 %v526
    %551 = vmatprep.subr.mxu0 0.0
    %552 = vmatpush1.msra.mxu0 %v527
    %553 = vmatprep.subr.mxu0 0.0
    %554 = vmatpush1.msra.mxu0 %v528
    %555 = vmatprep.subr.mxu0 0.0
    %556 = vmatpush1.msra.mxu0 %v529
    %557 = vmatprep.subr.mxu0 0.0
    %558 = vmatpush1.msra.mxu0 0.0
    %559 = vmatprep.subr.mxu0 0.0
    %560 = vmatpush1.msra.mxu0 0.0
    %561 = vmatprep.subr.mxu0 0.0
    %562 = vmatpush1.msra.mxu0 0.0
    %563 = vmatprep.subr.mxu0 0.0
    %564 = vmatpush1.msra.mxu0 0.0
    %565 = vmatprep.subr.mxu0 0.0
    %566 = vmatpush1.msra.mxu0 0.0
    %567 = vmatprep.subr.mxu0 0.0
    %568 = vmatpush1.msra.mxu0 0.0
    %569 = vmatprep.subr.mxu0 0.0
    %570 = vmatpush1.msra.mxu0 0.0
    %571 = vmatprep.subr.mxu0 0.0
    %572 = vmatpush1.msra.mxu0 0.0
    %573 = vmatprep.subr.mxu0 0.0
    %574 = vmatpush1.msra.mxu0 0.0
    %575 = vmatprep.subr.mxu0 0.0
    %576 = vmatpush1.msra.mxu0 0.0
    %577 = vmatprep.subr.mxu0 0.0
    %578 = vmatpush1.msra.mxu0 0.0
    %579 = vmatprep.subr.mxu0 0.0
    %580 = vmatpush1.msra.mxu0 0.0
    %581 = vmatprep.subr.mxu0 0.0
    %582 = vmatpush1.msra.mxu0 0.0
    %583 = vmatprep.subr.mxu0 0.0
    %584 = vmatpush1.msra.mxu0 0.0
    %585 = vmatprep.subr.mxu0 0.0
    %586 = vmatpush1.msra.mxu0 0.0
    %587 = vmatprep.subr.mxu0 0.0
    %588 = vmatpush1.msra.mxu0 0.0
    %589 = vmatprep.subr.mxu0 0.0
    %590 = vmatpush1.msra.mxu0 0.0
    %591 = vmatprep.subr.mxu0 0.0
    %592 = vmatpush1.msra.mxu0 0.0
    %593 = vmatprep.subr.mxu0 0.0
    %594 = vmatpush1.msra.mxu0 0.0
    %595 = vmatprep.subr.mxu0 0.0
    %596 = vmatpush1.msra.mxu0 0.0
    %597 = vmatprep.subr.mxu0 0.0
    %598 = vmatpush1.msra.mxu0 0.0
    %599 = vmatprep.subr.mxu0 0.0
    %600 = vmatpush1.msra.mxu0 0.0
    %601 = vmatprep.subr.mxu0 0.0
    %602 = vmatpush1.msra.mxu0 0.0
    %603 = vmatprep.subr.mxu0 0.0
    %604 = vmatpush1.msra.mxu0 0.0
    %605 = vmatprep.mubr.f32.mxu0 0.0
    %606 = vmatmul.mubr.f32.gmra.mrb[0].mxu0 %v539
    %v607 = vpop.f32.mrb[0].mxu0
    %v608 = vadd.f32 %v535, %v607
    %v609 = vpop.f32.mrb[0].mxu0
    %610 = vdwg.mxu0
    %v611 = vsub.f32 0.0, %v608
    %v612 = vmul.f32 %v611, 1.442695
    %v613 = vpow.pop %v612
    %v614 = vadd.f32 %v613, 1.0
    %v615 = vrcp.pop %v614
    %v616 = vmul.f32 %v608, %v615
    %v617 = vld [vmem:[%s9] sm:$0x1]
    %v619 = vlaneseq
    %v620 = vshrl.u32 %v619, 7
    %v621 = vsub.s32 0, %v620
    %v622 = vrot.slane %v617, %v621
    %v624 = vmul.f32 %v616, %v622
    %625 = vadd.xlane.f32.xlu0 %v624
    %v626 = vpop.xlane.xlu0 %625
    %v627 = vld [vmem:[#allocation2] sm:$0x1]
    %v629 = vlaneseq
    %v630 = vshrl.u32 %v629, 7
    %v631 = vsub.s32 0, %v630
    %v632 = vrot.slane %v627, %v631
    %v634 = vadd.f32 %v626, %v632
    %v635 = vlaneseq
    %v636 = vand.u32 %v635, 127
    %vm637 = vcmp.lt.s32.totalorder %v636, 32
    %639 = vset.pattern.permute.xlu0 0
    %640 = vperm.xlu0 %639, %v634
    %v641 = vpop.permute.xlu0 %640
    %v643 = vsel %vm637, %v616, %v641
    %644 = vst [vmem:[%s11] sm:$0xff] %v643
    // Predicated region
    $region50: #{pathnet_paep_forward.1} parent=1 // pred_check
      _
    $region51: #{pathnet_paep_forward.1} parent=1 // pred_check_branch
      %646 = sbr.rel (0) target = $region53
    $region52: #{pathnet_paep_forward.1} parent=1 // pred_region
      _
    $region53: #{pathnet_paep_forward.1} parent=1 // pred_fallthru
      _
    // Predicated region
    $region54: #{pathnet_paep_forward.1} parent=1 // pred_check
      _
    $region55: #{pathnet_paep_forward.1} parent=1 // pred_check_branch
      %648 = sbr.rel (0) target = $region57
    $region56: #{pathnet_paep_forward.1} parent=1 // pred_region
      _
    $region57: #{pathnet_paep_forward.1} parent=1 // pred_fallthru
      _
    %649 = vsyncpa [#allocation4], 1

</llo_original>
